<compile_context>
chip_gen: v6e
topology: v6e:2x2x1
jax: 0.10.0
libtpu: 0.0.40
codegen_flags: <defaults>
</compile_context>

<pallas_src>
import jax
import jax.numpy as jnp
from jax.experimental import pallas as pl
from jax.experimental.pallas import tpu as pltpu


def _round_up(v, m):
    return ((v + m - 1) // m) * m


def _qnet_kernel(x_ref, w1_ref, b1_ref, w2_ref, b2_ref, w3_ref, b3_ref, q_ref):
    wdt = w1_ref.dtype                        # weight dtype (f32 or bf16)
    x = x_ref[...]
    # layer 1: MXU matmul with f32 accumulate, bias + ReLU in f32 on the VPU.
    # (K=S=16 underutilizes the MXU no matter what; kernel is DMA-bound.)
    h1 = jnp.dot(x.astype(wdt), w1_ref[...], preferred_element_type=jnp.float32)
    h1 = jnp.maximum(h1 + b1_ref[...], 0.0)
    # layer 2
    h2 = jnp.dot(h1.astype(wdt), w2_ref[...], preferred_element_type=jnp.float32)
    h2 = jnp.maximum(h2 + b2_ref[...], 0.0)
    # layer 3: narrow (TB, A) output, masked store; far cheaper than padding.
    q = jnp.dot(h2.astype(wdt), w3_ref[...], preferred_element_type=jnp.float32)
    q_ref[...] = (q + b3_ref[...]).astype(q_ref.dtype)


def q_net_forward(x, params, *, block_b=2048):
    """Fused forward pass of Q_net.

    x: (B, state_dim) float32
    params: w1 (S,256), b1 (1,256), w2 (256,128), b2 (1,128),
            w3 (128,A), b3 (1,A).  Weights may be f32 or bf16; biases f32.
    returns q: (B, A) float32
    """
    w1, b1 = params["w1"], params["b1"]
    w2, b2 = params["w2"], params["b2"]
    w3, b3 = params["w3"], params["b3"]

    B, S = x.shape
    A = w3.shape[1]

    # Only sub-8 batches get padded (single sublane tile); otherwise the ragged
    # tail is handled by Pallas edge masking, avoiding an extra pass over x.
    B_eff = B
    if B < 8:
        x = jnp.zeros((8, S), x.dtype).at[:B].set(x)
        B_eff = 8

    # Batch tile: large enough to amortize per-step overhead, but keep >= 2
    # grid steps for mid/large batches so both v7x TensorCores get work.
    if B_eff <= 8:
        TB = 8
    else:
        TB = min(block_b, _round_up((B_eff + 1) // 2, 8))
    grid = (pl.cdiv(B_eff, TB),)

    def resident(shape):
        # weights/biases: same block index every grid step -> VMEM-resident.
        return pl.BlockSpec(shape, lambda i: tuple(0 for _ in shape))

    q = pl.pallas_call(
        _qnet_kernel,
        out_shape=jax.ShapeDtypeStruct((B_eff, A), jnp.float32),
        grid=grid,
        in_specs=[
            pl.BlockSpec((TB, S), lambda i: (i, 0)),       # x tile, pipelined
            resident(w1.shape), resident(b1.shape),
            resident(w2.shape), resident(b2.shape),
            resident(w3.shape), resident(b3.shape),
        ],
        out_specs=pl.BlockSpec((TB, A), lambda i: (i, 0)),  # lane-masked, tiny
        compiler_params=pltpu.CompilerParams(
            dimension_semantics=("parallel",),
        ),
    )(x, w1, b1, w2, b2, w3, b3)

    return q[:B] if B_eff != B else q


def init_params(key, state_dim, action_dim, dtype=jnp.float32):
    """Deterministic init mirroring nn.Linear's U(-1/sqrt(fan_in), 1/sqrt(fan_in)).

    Weights stored as (in_features, out_features) so each layer is x @ W + b.
    Weights may be cast to `dtype` (e.g. bf16); biases stay f32.
    """
    def linear(key, fan_in, fan_out):
        kw, kb = jax.random.split(key)
        bound = 1.0 / jnp.sqrt(jnp.float32(fan_in))
        w = jax.random.uniform(kw, (fan_in, fan_out), jnp.float32, -bound, bound)
        b = jax.random.uniform(kb, (1, fan_out), jnp.float32, -bound, bound)
        return w.astype(dtype), b

    k1, k2, k3 = jax.random.split(key, 3)
    w1, b1 = linear(k1, state_dim, 256)
    w2, b2 = linear(k2, 256, 128)
    w3, b3 = linear(k3, 128, action_dim)
    return {"w1": w1, "b1": b1, "w2": w2, "b2": b2, "w3": w3, "b3": b3}


def reference_forward(x, p):
    """Pure-JAX reference mirroring the kernel's precision policy."""
    wdt = p["w1"].dtype
    h1 = jnp.maximum(
        jnp.dot(x.astype(wdt), p["w1"], preferred_element_type=jnp.float32) + p["b1"], 0.0)
    h2 = jnp.maximum(
        jnp.dot(h1.astype(wdt), p["w2"], preferred_element_type=jnp.float32) + p["b2"], 0.0)
    return jnp.dot(h2.astype(wdt), p["w3"], preferred_element_type=jnp.float32) + p["b3"]


if __name__ == "__main__":
    state_dim, action_dim = 16, 4

    key = jax.random.PRNGKey(0)
    kx, kx2, kp = jax.random.split(key, 3)

    # f32-weight path (matches the PyTorch module numerics)
    p32 = init_params(kp, state_dim, action_dim, dtype=jnp.float32)

    # aligned small batch (single grid step)
    x8 = jax.random.normal(kx, (8, state_dim), jnp.float32)
    q8 = jax.block_until_ready(q_net_forward(x8, p32))
    assert q8.shape == (8, action_dim)
    assert jnp.allclose(q8, reference_forward(x8, p32), atol=1e-4, rtol=1e-4)

    # ragged batch: grid = cdiv(B, TB), partial last block handled by Pallas
    # edge masking (no wrapper-side zero-pad of x).
    x13 = jax.random.normal(kx2, (13, state_dim), jnp.float32)
    q13 = jax.block_until_ready(q_net_forward(x13, p32))
    assert q13.shape == (13, action_dim)
    assert jnp.allclose(q13, reference_forward(x13, p32), atol=1e-4, rtol=1e-4)

    # bf16-weight path (recommended default on v6e/v7x): f32 accumulate + f32
    # bias/ReLU; deliberate, documented numerics deviation with looser tol.
    pbf = {k: (v.astype(jnp.bfloat16) if k.startswith("w") else v)
           for k, v in p32.items()}
    qbf = jax.block_until_ready(q_net_forward(x8, pbf))
    assert qbf.shape == (8, action_dim)
    assert jnp.allclose(qbf, reference_forward(x8, pbf), atol=1e-3, rtol=1e-3)

    print("KERNEL_OK")
</pallas_src>

<mosaic_0001>
module attributes {stable_mosaic.version = 11 : i64} {
  func.func @_qnet_kernel(%arg0: i32, %arg1: memref<8x16xf32, #tpu.memory_space<vmem>>, %arg2: memref<16x256xf32, #tpu.memory_space<vmem>>, %arg3: memref<1x256xf32, #tpu.memory_space<vmem>>, %arg4: memref<256x128xf32, #tpu.memory_space<vmem>>, %arg5: memref<1x128xf32, #tpu.memory_space<vmem>>, %arg6: memref<128x4xf32, #tpu.memory_space<vmem>>, %arg7: memref<1x4xf32, #tpu.memory_space<vmem>>, %arg8: memref<8x4xf32, #tpu.memory_space<vmem>>) attributes {dimension_semantics = [#tpu.dimension_semantics<parallel>], iteration_bounds = array<i64: 1>, scalar_prefetch = 0 : i64, scratch_operands = 0 : i64, tpu.core_type = #tpu.core_type<tc>, window_params = [{transform_indices = @transform_0, window_bounds = array<i64: 8, 16>}, {pipeline_mode = #tpu.pipeline_mode<synchronous>, transform_indices = @transform_1, window_bounds = array<i64: 16, 256>}, {pipeline_mode = #tpu.pipeline_mode<synchronous>, transform_indices = @transform_2, window_bounds = array<i64: 1, 256>}, {pipeline_mode = #tpu.pipeline_mode<synchronous>, transform_indices = @transform_3, window_bounds = array<i64: 256, 128>}, {pipeline_mode = #tpu.pipeline_mode<synchronous>, transform_indices = @transform_4, window_bounds = array<i64: 1, 128>}, {pipeline_mode = #tpu.pipeline_mode<synchronous>, transform_indices = @transform_5, window_bounds = array<i64: 128, 4>}, {pipeline_mode = #tpu.pipeline_mode<synchronous>, transform_indices = @transform_6, window_bounds = array<i64: 1, 4>}, {transform_indices = @transform_7, window_bounds = array<i64: 8, 4>}]} {
    %c0 = arith.constant 0 : index
    %c0_0 = arith.constant 0 : index
    %0 = vector.load %arg1[%c0, %c0_0] : memref<8x16xf32, #tpu.memory_space<vmem>>, vector<8x16xf32>
    %c0_1 = arith.constant 0 : index
    %c0_2 = arith.constant 0 : index
    %1 = vector.load %arg2[%c0_1, %c0_2] : memref<16x256xf32, #tpu.memory_space<vmem>>, vector<16x256xf32>
    %cst = arith.constant dense<0.000000e+00> : vector<8x256xf32>
    %2 = tpu.matmul %0, %1, %cst {dimension_numbers = #tpu.dot_dimension_numbers<[1], [0], [0], [1], [0, 0, 1, 1], [], []>} : vector<8x16xf32>, vector<16x256xf32>, vector<8x256xf32> -> vector<8x256xf32>
    %c0_3 = arith.constant 0 : index
    %c0_4 = arith.constant 0 : index
    %3 = vector.load %arg3[%c0_3, %c0_4] : memref<1x256xf32, #tpu.memory_space<vmem>>, vector<1x256xf32>
    %4 = vector.broadcast %3 : vector<1x256xf32> to vector<8x256xf32>
    %5 = arith.addf %2, %4 : vector<8x256xf32>
    %cst_5 = arith.constant 0.000000e+00 : f32
    %6 = vector.broadcast %cst_5 : f32 to vector<8x256xf32>
    %7 = arith.maximumf %5, %6 : vector<8x256xf32>
    %c0_6 = arith.constant 0 : index
    %c0_7 = arith.constant 0 : index
    %8 = vector.load %arg4[%c0_6, %c0_7] : memref<256x128xf32, #tpu.memory_space<vmem>>, vector<256x128xf32>
    %cst_8 = arith.constant dense<0.000000e+00> : vector<8x128xf32>
    %9 = tpu.matmul %7, %8, %cst_8 {dimension_numbers = #tpu.dot_dimension_numbers<[1], [0], [0], [1], [0, 0, 1, 1], [], []>} : vector<8x256xf32>, vector<256x128xf32>, vector<8x128xf32> -> vector<8x128xf32>
    %c0_9 = arith.constant 0 : index
    %c0_10 = arith.constant 0 : index
    %10 = vector.load %arg5[%c0_9, %c0_10] : memref<1x128xf32, #tpu.memory_space<vmem>>, vector<1x128xf32>
    %11 = vector.broadcast %10 : vector<1x128xf32> to vector<8x128xf32>
    %12 = arith.addf %9, %11 : vector<8x128xf32>
    %cst_11 = arith.constant 0.000000e+00 : f32
    %13 = vector.broadcast %cst_11 : f32 to vector<8x128xf32>
    %14 = arith.maximumf %12, %13 : vector<8x128xf32>
    %c0_12 = arith.constant 0 : index
    %c0_13 = arith.constant 0 : index
    %15 = vector.load %arg6[%c0_12, %c0_13] : memref<128x4xf32, #tpu.memory_space<vmem>>, vector<128x4xf32>
    %cst_14 = arith.constant dense<0.000000e+00> : vector<8x4xf32>
    %16 = tpu.matmul %14, %15, %cst_14 {dimension_numbers = #tpu.dot_dimension_numbers<[1], [0], [0], [1], [0, 0, 1, 1], [], []>} : vector<8x128xf32>, vector<128x4xf32>, vector<8x4xf32> -> vector<8x4xf32>
    %c0_15 = arith.constant 0 : index
    %c0_16 = arith.constant 0 : index
    %17 = vector.load %arg7[%c0_15, %c0_16] : memref<1x4xf32, #tpu.memory_space<vmem>>, vector<1x4xf32>
    %18 = vector.broadcast %17 : vector<1x4xf32> to vector<8x4xf32>
    %19 = arith.addf %16, %18 : vector<8x4xf32>
    %c0_17 = arith.constant 0 : index
    %c0_18 = arith.constant 0 : index
    %20 = vector.load %arg8[%c0_17, %c0_18] : memref<8x4xf32, #tpu.memory_space<vmem>>, vector<8x4xf32>
    tpu.vector_store %arg8[%c0_17, %c0_18], %19 {strides = array<i32>} : memref<8x4xf32, #tpu.memory_space<vmem>>, vector<8x4xf32>,
    return
  }
  func.func @transform_0(%arg0: i32) -> (i32, i32) {
    %c0_i32 = arith.constant 0 : i32
    %c0_i32_0 = arith.constant 0 : i32
    return %arg0, %c0_i32 : i32, i32
  }
  func.func @transform_1(%arg0: i32) -> (i32, i32) {
    %c0_i32 = arith.constant 0 : i32
    %c0_i32_0 = arith.constant 0 : i32
    %c0_i32_1 = arith.constant 0 : i32
    return %c0_i32, %c0_i32_0 : i32, i32
  }
  func.func @transform_2(%arg0: i32) -> (i32, i32) {
    %c0_i32 = arith.constant 0 : i32
    %c0_i32_0 = arith.constant 0 : i32
    %c0_i32_1 = arith.constant 0 : i32
    return %c0_i32, %c0_i32_0 : i32, i32
  }
  func.func @transform_3(%arg0: i32) -> (i32, i32) {
    %c0_i32 = arith.constant 0 : i32
    %c0_i32_0 = arith.constant 0 : i32
    %c0_i32_1 = arith.constant 0 : i32
    return %c0_i32, %c0_i32_0 : i32, i32
  }
  func.func @transform_4(%arg0: i32) -> (i32, i32) {
    %c0_i32 = arith.constant 0 : i32
    %c0_i32_0 = arith.constant 0 : i32
    %c0_i32_1 = arith.constant 0 : i32
    return %c0_i32, %c0_i32_0 : i32, i32
  }
  func.func @transform_5(%arg0: i32) -> (i32, i32) {
    %c0_i32 = arith.constant 0 : i32
    %c0_i32_0 = arith.constant 0 : i32
    %c0_i32_1 = arith.constant 0 : i32
    return %c0_i32, %c0_i32_0 : i32, i32
  }
  func.func @transform_6(%arg0: i32) -> (i32, i32) {
    %c0_i32 = arith.constant 0 : i32
    %c0_i32_0 = arith.constant 0 : i32
    %c0_i32_1 = arith.constant 0 : i32
    return %c0_i32, %c0_i32_0 : i32, i32
  }
  func.func @transform_7(%arg0: i32) -> (i32, i32) {
    %c0_i32 = arith.constant 0 : i32
    %c0_i32_0 = arith.constant 0 : i32
    return %arg0, %c0_i32 : i32, i32
  }
}

</mosaic_0001>

<llo_original>
// kernel: tpu_custom_call.1
$region0: #{tpu_custom_call.1}
  #allocation0 [shape = 'u32[]', space=smem, size = 0x4, offset = 0x4, fixed_abs, tag = 'smem constant byte address 0x4 - core index']
  #allocation1 [shape = 'u32[144,128]{1,0:T(1,128)}', space=vmem, size = 0x12000, scoped, tag = 'internal scratch']
  %s0 = inlined_call_operand.vmem [shape: f32[8,16], index: 0, kind: input, shape index: {}]
  %s1 = inlined_call_operand.vmem [shape: f32[16,256], index: 1, kind: input, shape index: {}]
  %s2 = inlined_call_operand.vmem [shape: f32[1,256], index: 2, kind: input, shape index: {}]
  %s3 = inlined_call_operand.hbm [shape: f32[256,128], index: 3, kind: input, shape index: {}]
  %s4 = inlined_call_operand.vmem [shape: f32[1,128], index: 4, kind: input, shape index: {}]
  %s5 = inlined_call_operand.vmem [shape: f32[128,4], index: 5, kind: input, shape index: {}]
  %s6 = inlined_call_operand.vmem [shape: f32[1,4], index: 6, kind: input, shape index: {}]
  %s7 = inlined_call_operand.vmem [shape: f32[8,4], index: 7, kind: output, shape index: {}]
  %s8 = sld [smem:[#allocation0]]
  $region42: #{tpu_custom_call.1} parent=0
    _
  %s10 = ssub.s32 1, %s8
  %s11 = scalar_select 0, %s10, %s8
  $region1: #{tpu_custom_call.1} parent=0
    #allocation2 [shape = 'u8[131072]{0}', space=vmem, size = 0x20000, scoped, tag = 'input window, operand 3, single buffered']
    #allocation3 [shape = 's32[1]{0}', space=sflag, size = 0x4, scoped, tag = 'scoped memory for tpu_custom_call.1']
    %12 = vsyncpa [#allocation3], 0
    // Predicated region
    $region2: #{tpu_custom_call.1} parent=1 // pred_check
      _
    $region3: #{tpu_custom_call.1} parent=1 // pred_check_branch
      %14 = sbr.rel (0) target = $region5
    $region4: #{tpu_custom_call.1} parent=1 // pred_region
      _
    $region5: #{tpu_custom_call.1} parent=1 // pred_fallthru
      _
    // Predicated region
    $region6: #{tpu_custom_call.1} parent=1 // pred_check
      _
    $region7: #{tpu_custom_call.1} parent=1 // pred_check_branch
      %16 = sbr.rel (0) target = $region9
    $region8: #{tpu_custom_call.1} parent=1 // pred_region
      _
    $region9: #{tpu_custom_call.1} parent=1 // pred_fallthru
      _
    // Predicated region
    $region10: #{tpu_custom_call.1} parent=1 // pred_check
      _
    $region11: #{tpu_custom_call.1} parent=1 // pred_check_branch
      %18 = sbr.rel (0) target = $region13
    $region12: #{tpu_custom_call.1} parent=1 // pred_region
      _
    $region13: #{tpu_custom_call.1} parent=1 // pred_fallthru
      _
    // Predicated region
    $region14: #{tpu_custom_call.1} parent=1 // pred_check
      _
    $region15: #{tpu_custom_call.1} parent=1 // pred_check_branch
      %20 = sbr.rel (0) target = $region17
    $region16: #{tpu_custom_call.1} parent=1 // pred_region
      %s22 = ssub.s32 4096, 4096
      %23 = vsyncadd [#allocation3], %s22
      %s24 = sshll.u32 [#allocation2], 4
      %s25 = int_to_ptr.vmem [resolvable:$true] %s24
      %30 = dma.hbm_to_vmem [thread:$0]  %s3, 4096, %s25, [#allocation3], 128, 128, 8
    $region17: #{tpu_custom_call.1} parent=1 // pred_fallthru
      _
    // Predicated region
    $region18: #{tpu_custom_call.1} parent=1 // pred_check
      _
    $region19: #{tpu_custom_call.1} parent=1 // pred_check_branch
      %32 = sbr.rel (0) target = $region21
    $region20: #{tpu_custom_call.1} parent=1 // pred_region
      _
    $region21: #{tpu_custom_call.1} parent=1 // pred_fallthru
      _
    // Predicated region
    $region22: #{tpu_custom_call.1} parent=1 // pred_check
      _
    $region23: #{tpu_custom_call.1} parent=1 // pred_check_branch
      %34 = sbr.rel (0) target = $region25
    $region24: #{tpu_custom_call.1} parent=1 // pred_region
      _
    $region25: #{tpu_custom_call.1} parent=1 // pred_fallthru
      _
    // Predicated region
    $region26: #{tpu_custom_call.1} parent=1 // pred_check
      _
    $region27: #{tpu_custom_call.1} parent=1 // pred_check_branch
      %36 = sbr.rel (0) target = $region29
    $region28: #{tpu_custom_call.1} parent=1 // pred_region
      _
    $region29: #{tpu_custom_call.1} parent=1 // pred_fallthru
      _
    // Predicated region
    $region30: #{tpu_custom_call.1} parent=1 // pred_check
      _
    $region31: #{tpu_custom_call.1} parent=1 // pred_check_branch
      %38 = sbr.rel (0) target = $region33
    $region32: #{tpu_custom_call.1} parent=1 // pred_region
      %39 = dma.done [#allocation3], 4096
    $region33: #{tpu_custom_call.1} parent=1 // pred_fallthru
      _
    %v40 = vld [vmem:[%s0] sm:$0xff]
    %v41 = vld [vmem:[%s1] sm:$0xff]
    %v42 = vld [vmem:[%s1 + $0x8] sm:$0xff]
    %v43 = vld [vmem:[%s1 + $0x10] sm:$0xff]
    %v44 = vld [vmem:[%s1 + $0x18] sm:$0xff]
    %v45 = vld [vmem:[%s2] sm:$0x3]
    %v47 = vlaneseq
    %v48 = vshrl.u32 %v47, 7
    %v49 = vsub.s32 0, %v48
    %v50 = vrot.slane %v45, %v49
    %v51 = vlaneseq
    %v52 = vshrl.u32 %v51, 7
    %v53 = vsub.s32 1, %v52
    %v54 = vrot.slane %v45, %v53
    %vm57 = vcmask 130048
    %v59 = vsel %vm57, %v40, 0
    %61 = vmatprep.subr.mxu0 0.0
    %62 = vmatpush1.msra.mxu0 0.0
    %63 = vmatprep.subr.mxu0 0.0
    %64 = vmatpush1.msra.mxu0 0.0
    %65 = vmatprep.subr.mxu0 0.0
    %66 = vmatpush1.msra.mxu0 0.0
    %67 = vmatprep.subr.mxu0 0.0
    %68 = vmatpush1.msra.mxu0 0.0
    %69 = vmatprep.subr.mxu0 0.0
    %70 = vmatpush1.msra.mxu0 0.0
    %71 = vmatprep.subr.mxu0 0.0
    %72 = vmatpush1.msra.mxu0 0.0
    %73 = vmatprep.subr.mxu0 0.0
    %74 = vmatpush1.msra.mxu0 0.0
    %75 = vmatprep.subr.mxu0 0.0
    %76 = vmatpush1.msra.mxu0 0.0
    %77 = vmatprep.subr.mxu0 0.0
    %78 = vmatpush1.msra.mxu0 0.0
    %79 = vmatprep.subr.mxu0 0.0
    %80 = vmatpush1.msra.mxu0 0.0
    %81 = vmatprep.subr.mxu0 0.0
    %82 = vmatpush1.msra.mxu0 0.0
    %83 = vmatprep.subr.mxu0 0.0
    %84 = vmatpush1.msra.mxu0 0.0
    %85 = vmatprep.subr.mxu0 0.0
    %86 = vmatpush1.msra.mxu0 0.0
    %87 = vmatprep.subr.mxu0 0.0
    %88 = vmatpush1.msra.mxu0 0.0
    %89 = vmatprep.subr.mxu0 %v44
    %90 = vmatpush1.msra.mxu0 %v43
    %91 = vmatprep.subr.mxu0 %v42
    %92 = vmatpush1.msra.mxu0 %v41
    %93 = vmatprep.subr.mxu0 0.0
    %94 = vmatpush2.msra.mxu0 0.0
    %95 = vmatprep.subr.mxu0 0.0
    %96 = vmatpush2.msra.mxu0 0.0
    %97 = vmatprep.subr.mxu0 0.0
    %98 = vmatpush2.msra.mxu0 0.0
    %99 = vmatprep.subr.mxu0 0.0
    %100 = vmatpush2.msra.mxu0 0.0
    %101 = vmatprep.subr.mxu0 0.0
    %102 = vmatpush2.msra.mxu0 0.0
    %103 = vmatprep.subr.mxu0 0.0
    %104 = vmatpush2.msra.mxu0 0.0
    %105 = vmatprep.subr.mxu0 0.0
    %106 = vmatpush2.msra.mxu0 0.0
    %107 = vmatprep.subr.mxu0 0.0
    %108 = vmatpush2.msra.mxu0 0.0
    %109 = vmatprep.subr.mxu0 0.0
    %110 = vmatpush2.msra.mxu0 0.0
    %111 = vmatprep.subr.mxu0 0.0
    %112 = vmatpush2.msra.mxu0 0.0
    %113 = vmatprep.subr.mxu0 0.0
    %114 = vmatpush2.msra.mxu0 0.0
    %115 = vmatprep.subr.mxu0 0.0
    %116 = vmatpush2.msra.mxu0 0.0
    %117 = vmatprep.subr.mxu0 0.0
    %118 = vmatpush2.msra.mxu0 0.0
    %119 = vmatprep.subr.mxu0 0.0
    %120 = vmatpush2.msra.mxu0 0.0
    %121 = vmatprep.subr.mxu0 0.0
    %122 = vmatpush2.msra.mxu0 0.0
    %123 = vmatprep.subr.mxu0 0.0
    %124 = vmatpush2.msra.mxu0 0.0
    %125 = vmatprep.mubr.f32.mxu0 0.0
    %126 = vmatmul.mubr.f32.gmra.mxu0 %v59
    %v127 = vpop.f32.mrf.mxu0
    %v128 = vadd.f32 %v50, %v127
    %v129 = vpop.f32.mrf.mxu0
    %v130 = vadd.f32 %v54, %v129
    %131 = vdwg.mxu0
    %v132 = vmax.f32 %v128, 0.0
    %v133 = vmax.f32 %v130, 0.0
    %v134 = vld [vmem:[#allocation2] sm:$0xff]
    %v135 = vld [vmem:[#allocation2 + $0x8] sm:$0xff]
    %v136 = vld [vmem:[#allocation2 + $0x10] sm:$0xff]
    %v137 = vld [vmem:[#allocation2 + $0x18] sm:$0xff]
    %v138 = vld [vmem:[#allocation2 + $0x20] sm:$0xff]
    %v139 = vld [vmem:[#allocation2 + $0x28] sm:$0xff]
    %v140 = vld [vmem:[#allocation2 + $0x30] sm:$0xff]
    %v141 = vld [vmem:[#allocation2 + $0x38] sm:$0xff]
    %v142 = vld [vmem:[#allocation2 + $0x40] sm:$0xff]
    %v143 = vld [vmem:[#allocation2 + $0x48] sm:$0xff]
    %v144 = vld [vmem:[#allocation2 + $0x50] sm:$0xff]
    %v145 = vld [vmem:[#allocation2 + $0x58] sm:$0xff]
    %v146 = vld [vmem:[#allocation2 + $0x60] sm:$0xff]
    %v147 = vld [vmem:[#allocation2 + $0x68] sm:$0xff]
    %v148 = vld [vmem:[#allocation2 + $0x70] sm:$0xff]
    %v149 = vld [vmem:[#allocation2 + $0x78] sm:$0xff]
    %v150 = vld [vmem:[#allocation2 + $0x80] sm:$0xff]
    %v151 = vld [vmem:[#allocation2 + $0x88] sm:$0xff]
    %v152 = vld [vmem:[#allocation2 + $0x90] sm:$0xff]
    %v153 = vld [vmem:[#allocation2 + $0x98] sm:$0xff]
    %v154 = vld [vmem:[#allocation2 + $0xa0] sm:$0xff]
    %v155 = vld [vmem:[#allocation2 + $0xa8] sm:$0xff]
    %v156 = vld [vmem:[#allocation2 + $0xb0] sm:$0xff]
    %v157 = vld [vmem:[#allocation2 + $0xb8] sm:$0xff]
    %v158 = vld [vmem:[#allocation2 + $0xc0] sm:$0xff]
    %v159 = vld [vmem:[#allocation2 + $0xc8] sm:$0xff]
    %v160 = vld [vmem:[#allocation2 + $0xd0] sm:$0xff]
    %v161 = vld [vmem:[#allocation2 + $0xd8] sm:$0xff]
    %v162 = vld [vmem:[#allocation2 + $0xe0] sm:$0xff]
    %v163 = vld [vmem:[#allocation2 + $0xe8] sm:$0xff]
    %v164 = vld [vmem:[#allocation2 + $0xf0] sm:$0xff]
    %v165 = vld [vmem:[#allocation2 + $0xf8] sm:$0xff]
    %v166 = vld [vmem:[%s4] sm:$0x1]
    %v168 = vlaneseq
    %v169 = vshrl.u32 %v168, 7
    %v170 = vsub.s32 0, %v169
    %v171 = vrot.slane %v166, %v170
    %173 = vmatprep.subr.mxu0 0.0
    %174 = vmatpush1.msra.mxu0 %v149
    %175 = vmatprep.subr.mxu0 0.0
    %176 = vmatpush1.msra.mxu0 %v148
    %177 = vmatprep.subr.mxu0 0.0
    %178 = vmatpush1.msra.mxu0 %v147
    %179 = vmatprep.subr.mxu0 0.0
    %180 = vmatpush1.msra.mxu0 %v146
    %181 = vmatprep.subr.mxu0 0.0
    %182 = vmatpush1.msra.mxu0 %v145
    %183 = vmatprep.subr.mxu0 0.0
    %184 = vmatpush1.msra.mxu0 %v144
    %185 = vmatprep.subr.mxu0 0.0
    %186 = vmatpush1.msra.mxu0 %v143
    %187 = vmatprep.subr.mxu0 0.0
    %188 = vmatpush1.msra.mxu0 %v142
    %189 = vmatprep.subr.mxu0 0.0
    %190 = vmatpush1.msra.mxu0 %v141
    %191 = vmatprep.subr.mxu0 0.0
    %192 = vmatpush1.msra.mxu0 %v140
    %193 = vmatprep.subr.mxu0 0.0
    %194 = vmatpush1.msra.mxu0 %v139
    %195 = vmatprep.subr.mxu0 0.0
    %196 = vmatpush1.msra.mxu0 %v138
    %197 = vmatprep.subr.mxu0 0.0
    %198 = vmatpush1.msra.mxu0 %v137
    %199 = vmatprep.subr.mxu0 0.0
    %200 = vmatpush1.msra.mxu0 %v136
    %201 = vmatprep.subr.mxu0 0.0
    %202 = vmatpush1.msra.mxu0 %v135
    %203 = vmatprep.subr.mxu0 0.0
    %204 = vmatpush1.msra.mxu0 %v134
    %205 = vmatprep.subr.mxu0 0.0
    %206 = vmatpush2.msra.mxu0 %v165
    %207 = vmatprep.subr.mxu0 0.0
    %208 = vmatpush2.msra.mxu0 %v164
    %209 = vmatprep.subr.mxu0 0.0
    %210 = vmatpush2.msra.mxu0 %v163
    %211 = vmatprep.subr.mxu0 0.0
    %212 = vmatpush2.msra.mxu0 %v162
    %213 = vmatprep.subr.mxu0 0.0
    %214 = vmatpush2.msra.mxu0 %v161
    %215 = vmatprep.subr.mxu0 0.0
    %216 = vmatpush2.msra.mxu0 %v160
    %217 = vmatprep.subr.mxu0 0.0
    %218 = vmatpush2.msra.mxu0 %v159
    %219 = vmatprep.subr.mxu0 0.0
    %220 = vmatpush2.msra.mxu0 %v158
    %221 = vmatprep.subr.mxu0 0.0
    %222 = vmatpush2.msra.mxu0 %v157
    %223 = vmatprep.subr.mxu0 0.0
    %224 = vmatpush2.msra.mxu0 %v156
    %225 = vmatprep.subr.mxu0 0.0
    %226 = vmatpush2.msra.mxu0 %v155
    %227 = vmatprep.subr.mxu0 0.0
    %228 = vmatpush2.msra.mxu0 %v154
    %229 = vmatprep.subr.mxu0 0.0
    %230 = vmatpush2.msra.mxu0 %v153
    %231 = vmatprep.subr.mxu0 0.0
    %232 = vmatpush2.msra.mxu0 %v152
    %233 = vmatprep.subr.mxu0 0.0
    %234 = vmatpush2.msra.mxu0 %v151
    %235 = vmatprep.subr.mxu0 0.0
    %236 = vmatpush2.msra.mxu0 %v150
    %237 = vmatprep.mubr.f32.mxu0 %v133
    %238 = vmatmul.mubr.f32.gmra.mxu0 %v132
    %v239 = vpop.f32.mrf.mxu0
    %v240 = vadd.f32 %v171, %v239
    %v241 = vpop.f32.mrf.mxu0
    %242 = vdwg.mxu0
    %v243 = vmax.f32 %v240, 0.0
    %v244 = vld [vmem:[%s5] sm:$0xff]
    %v245 = vld [vmem:[%s5 + $0x8] sm:$0xff]
    %v246 = vld [vmem:[%s5 + $0x10] sm:$0xff]
    %v247 = vld [vmem:[%s5 + $0x18] sm:$0xff]
    %v248 = vld [vmem:[%s5 + $0x20] sm:$0xff]
    %v249 = vld [vmem:[%s5 + $0x28] sm:$0xff]
    %v250 = vld [vmem:[%s5 + $0x30] sm:$0xff]
    %v251 = vld [vmem:[%s5 + $0x38] sm:$0xff]
    %v252 = vld [vmem:[%s5 + $0x40] sm:$0xff]
    %v253 = vld [vmem:[%s5 + $0x48] sm:$0xff]
    %v254 = vld [vmem:[%s5 + $0x50] sm:$0xff]
    %v255 = vld [vmem:[%s5 + $0x58] sm:$0xff]
    %v256 = vld [vmem:[%s5 + $0x60] sm:$0xff]
    %v257 = vld [vmem:[%s5 + $0x68] sm:$0xff]
    %v258 = vld [vmem:[%s5 + $0x70] sm:$0xff]
    %v259 = vld [vmem:[%s5 + $0x78] sm:$0xff]
    %v260 = vld [vmem:[%s6] sm:$0x1]
    %v262 = vlaneseq
    %v263 = vshrl.u32 %v262, 7
    %v264 = vsub.s32 0, %v263
    %v265 = vrot.slane %v260, %v264
    %267 = vmatprep.subr.mxu0 0.0
    %268 = vmatpush1.msra.mxu0 %v259
    %269 = vmatprep.subr.mxu0 0.0
    %270 = vmatpush1.msra.mxu0 %v258
    %271 = vmatprep.subr.mxu0 0.0
    %272 = vmatpush1.msra.mxu0 %v257
    %273 = vmatprep.subr.mxu0 0.0
    %274 = vmatpush1.msra.mxu0 %v256
    %275 = vmatprep.subr.mxu0 0.0
    %276 = vmatpush1.msra.mxu0 %v255
    %277 = vmatprep.subr.mxu0 0.0
    %278 = vmatpush1.msra.mxu0 %v254
    %279 = vmatprep.subr.mxu0 0.0
    %280 = vmatpush1.msra.mxu0 %v253
    %281 = vmatprep.subr.mxu0 0.0
    %282 = vmatpush1.msra.mxu0 %v252
    %283 = vmatprep.subr.mxu0 0.0
    %284 = vmatpush1.msra.mxu0 %v251
    %285 = vmatprep.subr.mxu0 0.0
    %286 = vmatpush1.msra.mxu0 %v250
    %287 = vmatprep.subr.mxu0 0.0
    %288 = vmatpush1.msra.mxu0 %v249
    %289 = vmatprep.subr.mxu0 0.0
    %290 = vmatpush1.msra.mxu0 %v248
    %291 = vmatprep.subr.mxu0 0.0
    %292 = vmatpush1.msra.mxu0 %v247
    %293 = vmatprep.subr.mxu0 0.0
    %294 = vmatpush1.msra.mxu0 %v246
    %295 = vmatprep.subr.mxu0 0.0
    %296 = vmatpush1.msra.mxu0 %v245
    %297 = vmatprep.subr.mxu0 0.0
    %298 = vmatpush1.msra.mxu0 %v244
    %299 = vmatprep.subr.mxu0 0.0
    %300 = vmatpush2.msra.mxu0 0.0
    %301 = vmatprep.subr.mxu0 0.0
    %302 = vmatpush2.msra.mxu0 0.0
    %303 = vmatprep.subr.mxu0 0.0
    %304 = vmatpush2.msra.mxu0 0.0
    %305 = vmatprep.subr.mxu0 0.0
    %306 = vmatpush2.msra.mxu0 0.0
    %307 = vmatprep.subr.mxu0 0.0
    %308 = vmatpush2.msra.mxu0 0.0
    %309 = vmatprep.subr.mxu0 0.0
    %310 = vmatpush2.msra.mxu0 0.0
    %311 = vmatprep.subr.mxu0 0.0
    %312 = vmatpush2.msra.mxu0 0.0
    %313 = vmatprep.subr.mxu0 0.0
    %314 = vmatpush2.msra.mxu0 0.0
    %315 = vmatprep.subr.mxu0 0.0
    %316 = vmatpush2.msra.mxu0 0.0
    %317 = vmatprep.subr.mxu0 0.0
    %318 = vmatpush2.msra.mxu0 0.0
    %319 = vmatprep.subr.mxu0 0.0
    %320 = vmatpush2.msra.mxu0 0.0
    %321 = vmatprep.subr.mxu0 0.0
    %322 = vmatpush2.msra.mxu0 0.0
    %323 = vmatprep.subr.mxu0 0.0
    %324 = vmatpush2.msra.mxu0 0.0
    %325 = vmatprep.subr.mxu0 0.0
    %326 = vmatpush2.msra.mxu0 0.0
    %327 = vmatprep.subr.mxu0 0.0
    %328 = vmatpush2.msra.mxu0 0.0
    %329 = vmatprep.subr.mxu0 0.0
    %330 = vmatpush2.msra.mxu0 0.0
    %331 = vmatprep.mubr.f32.mxu0 0.0
    %332 = vmatmul.mubr.f32.gmra.mxu0 %v243
    %v333 = vpop.f32.mrf.mxu0
    %v334 = vadd.f32 %v265, %v333
    %v335 = vpop.f32.mrf.mxu0
    %336 = vdwg.mxu0
    %vm337 = vcmask 31744
    %338 = vst.msk [vmem:[%s7] sm:$0xff] %vm337, %v334
    // Predicated region
    $region34: #{tpu_custom_call.1} parent=1 // pred_check
      _
    $region35: #{tpu_custom_call.1} parent=1 // pred_check_branch
      %340 = sbr.rel (0) target = $region37
    $region36: #{tpu_custom_call.1} parent=1 // pred_region
      _
    $region37: #{tpu_custom_call.1} parent=1 // pred_fallthru
      _
    // Predicated region
    $region38: #{tpu_custom_call.1} parent=1 // pred_check
      _
    $region39: #{tpu_custom_call.1} parent=1 // pred_check_branch
      %342 = sbr.rel (0) target = $region41
    $region40: #{tpu_custom_call.1} parent=1 // pred_region
      _
    $region41: #{tpu_custom_call.1} parent=1 // pred_fallthru
      _
    %343 = vsyncpa [#allocation3], 1

</llo_original>
